<compile_context>
chip_gen: v7x
topology: tpu7x:2x2x1
jax: 0.10.0
libtpu: 0.0.40
codegen_flags: <defaults>
</compile_context>

<pallas_src>
import functools

import jax
import jax.numpy as jnp
from jax import lax
from jax.experimental import pallas as pl
from jax.experimental.pallas import tpu as pltpu


# ---------------------------------------------------------------------------
# helpers
# ---------------------------------------------------------------------------
def _round_up(v, m):
    return ((v + m - 1) // m) * m


def _vmem_budget_bytes():
    """~3/4 of physical per-core VMEM; generation-aware fallback."""
    cap = None
    try:
        cap = int(pltpu.get_tpu_info().vmem_capacity_bytes)
    except Exception:
        cap = None
    if not cap or cap <= 0:
        kind = ""
        try:
            kind = str(jax.devices()[0].device_kind).lower()
        except Exception:
            pass
        # v7x: 64 MiB per TensorCore; v5e / v5p / v6e: 128 MiB.
        cap = (64 * 1024 * 1024 if ("v7" in kind or "7x" in kind)
               else 128 * 1024 * 1024)
    return (3 * cap) // 4


def _pick_chunk(T, chunk=None):
    """Lane-chunk width for the full-slab path (multiple of 128)."""
    if chunk is not None:
        return max(128, _round_up(int(chunk), 128))
    return min(2048, _round_up(T, 128))


def _pick_tile_t(C, T, itemsize, budget, tile_t=None):
    """Largest multiple-of-128 tile s.t. 2x(in)+2x(out) blocks fit ~half budget."""
    if tile_t is not None:
        tt = max(128, (int(tile_t) // 128) * 128)
    else:
        per_lane = 4 * C * itemsize                # double-buffered in + out
        tt = max(128, ((budget // 2) // per_lane) // 128 * 128)
        tt = min(tt, 32768)                        # keep the block sane
    if T >= 128:
        tt = min(tt, (T // 128) * 128)             # never exceed the array dim
    else:
        tt = T                                     # tiny T: one full-dim block
    return tt


# ---------------------------------------------------------------------------
# Path A: full (C, T) slab resident per grid step, chunked in-kernel loop
#         (2x HBM traffic; no full-slab f32 temporaries)
# ---------------------------------------------------------------------------
def _gcln_full_kernel(x_ref, gamma_ref, beta_ref, o_ref, s1_ref, s2_ref, *,
                      eps, inv_cnt, chunk, n_chunks, t_valid):
    s1_ref[...] = jnp.zeros_like(s1_ref)
    s2_ref[...] = jnp.zeros_like(s2_ref)

    # ---- pass 1: accumulate sum / sum-of-squares in lane chunks ----
    def _accum(i, carry):
        start = pl.multiple_of(i * chunk, 128)
        xf = x_ref[:, pl.ds(start, chunk)].astype(jnp.float32)   # (C, chunk)
        s1_ref[...] += jnp.sum(xf, axis=0, keepdims=True)        # (1, chunk)
        s2_ref[...] += jnp.sum(xf * xf, axis=0, keepdims=True)
        return carry

    lax.fori_loop(0, n_chunks - 1, _accum, 0)

    # Last chunk: the block may be padded past the true T -> mask the pad lanes.
    last = (n_chunks - 1) * chunk
    xf = x_ref[:, pl.ds(last, chunk)].astype(jnp.float32)
    if chunk * n_chunks != t_valid:
        col = lax.broadcasted_iota(jnp.int32, xf.shape, 1) + last
        xf = jnp.where(col < t_valid, xf, 0.0)
    s1_ref[...] += jnp.sum(xf, axis=0, keepdims=True)
    s2_ref[...] += jnp.sum(xf * xf, axis=0, keepdims=True)

    # ---- finalize: fold affine into per-channel scale / shift ----
    s1 = jnp.sum(s1_ref[...], keepdims=True)                     # (1, 1)
    s2 = jnp.sum(s2_ref[...], keepdims=True)
    mean = s1 * inv_cnt
    var = jnp.maximum(s2 * inv_cnt - mean * mean, 0.0)
    inv_std = lax.rsqrt(var + eps)
    scale = gamma_ref[...].astype(jnp.float32) * inv_std         # (C, 1)
    shift = beta_ref[...].astype(jnp.float32) - mean * scale     # (C, 1)

    # ---- pass 2: normalize straight into the output block ----
    def _norm(i, carry):
        start = pl.multiple_of(i * chunk, 128)
        xf = x_ref[:, pl.ds(start, chunk)].astype(jnp.float32)
        o_ref[:, pl.ds(start, chunk)] = (xf * scale + shift).astype(o_ref.dtype)
        return carry

    lax.fori_loop(0, n_chunks, _norm, 0)   # pad lanes are masked at writeback


def _gcln_full_slab(x, gamma, beta, eps, budget, chunk):
    N, C, T = x.shape
    itemsize = jnp.dtype(x.dtype).itemsize
    n_chunks = pl.cdiv(T, chunk)
    t_blk = n_chunks * chunk                                     # multiple of 128

    kernel = functools.partial(
        _gcln_full_kernel, eps=float(eps), inv_cnt=1.0 / (C * T),
        chunk=chunk, n_chunks=n_chunks, t_valid=T)

    return pl.pallas_call(
        kernel,
        out_shape=jax.ShapeDtypeStruct((N, C, T), x.dtype),
        grid_spec=pltpu.PrefetchScalarGridSpec(
            num_scalar_prefetch=0,
            grid=(N,),
            in_specs=[
                pl.BlockSpec((None, C, t_blk), lambda n: (n, 0, 0)),  # x (batch squeezed)
                pl.BlockSpec((C, 1), lambda n: (0, 0)),               # gamma (shared)
                pl.BlockSpec((C, 1), lambda n: (0, 0)),               # beta  (shared)
            ],
            out_specs=pl.BlockSpec((None, C, t_blk), lambda n: (n, 0, 0)),
            scratch_shapes=[
                pltpu.VMEM((1, chunk), jnp.float32),   # vector partial sum
                pltpu.VMEM((1, chunk), jnp.float32),   # vector partial sum of squares
            ],
        ),
        compiler_params=pltpu.CompilerParams(
            dimension_semantics=("parallel",),
            vmem_limit_bytes=int(budget),
        ),
        cost_estimate=pl.CostEstimate(
            flops=6 * N * C * T,
            transcendentals=N,
            bytes_accessed=2 * N * C * T * itemsize,
        ),
    )(x, gamma, beta)


# ---------------------------------------------------------------------------
# Path B: single fused pallas_call, grid (N, 2*nt):
#   steps [0, nt)   -> accumulate stats over lane-dense tiles
#   step  nt-1      -> fold gamma/beta into scale/shift kept in VMEM scratch
#   steps [nt, 2nt) -> re-stream x and normalize (3x HBM traffic total)
# ---------------------------------------------------------------------------
def _gcln_tiled_kernel(x_ref, gamma_ref, beta_ref, o_ref,
                       s1_ref, s2_ref, scale_ref, shift_ref, *,
                       eps, inv_cnt, nt, tile_t, t_valid):
    t = pl.program_id(1)
    needs_mask = (nt * tile_t) != t_valid   # static

    @pl.when(t == 0)
    def _():
        s1_ref[...] = jnp.zeros_like(s1_ref)
        s2_ref[...] = jnp.zeros_like(s2_ref)

    @pl.when(t < nt)
    def _():
        xf = x_ref[...].astype(jnp.float32)                        # (C, tile_t)
        if needs_mask:
            col = lax.broadcasted_iota(jnp.int32, xf.shape, 1) + t * tile_t
            xf = jnp.where(col < t_valid, xf, 0.0)
        # Bulk of the reduce is cross-vreg VPU adds; only a 3-step sublane
        # reduce per tile. Full lane reduce happens once, in the finalize.
        s1_ref[...] += jnp.sum(xf, axis=0, keepdims=True)          # (1, tile_t)
        s2_ref[...] += jnp.sum(xf * xf, axis=0, keepdims=True)

    @pl.when(t == nt - 1)
    def _():
        s1 = jnp.sum(s1_ref[...], keepdims=True)                   # (1, 1)
        s2 = jnp.sum(s2_ref[...], keepdims=True)
        mean = s1 * inv_cnt
        var = jnp.maximum(s2 * inv_cnt - mean * mean, 0.0)
        inv_std = lax.rsqrt(var + eps)
        scale = gamma_ref[...].astype(jnp.float32) * inv_std       # (C, 1)
        scale_ref[...] = scale
        shift_ref[...] = beta_ref[...].astype(jnp.float32) - mean * scale

    @pl.when(t >= nt)
    def _():
        xf = x_ref[...].astype(jnp.float32)
        o_ref[...] = (xf * scale_ref[...] + shift_ref[...]).astype(o_ref.dtype)


def _gcln_tiled(x, gamma, beta, eps, budget, tile_t):
    N, C, T = x.shape
    itemsize = jnp.dtype(x.dtype).itemsize
    nt = pl.cdiv(T, tile_t)

    kernel = functools.partial(
        _gcln_tiled_kernel, eps=float(eps), inv_cnt=1.0 / (C * T),
        nt=nt, tile_t=tile_t, t_valid=T)

    # Input tiles are visited twice (stats pass, normalize pass).
    x_map = lambda n, t: (n, 0, t % nt)
    par_map = lambda n, t: (0, 0)
    # Output block index stays at 0 during the stats pass (no writeback),
    # then follows the normalize pass.
    out_map = lambda n, t: (n, 0, jnp.maximum(t - nt, 0))

    # NOTE: further tuning (not applied): on v7x with N==1 the stats pass could
    # be split across the 2 TensorCores; and pipeline_mode=pl.Buffered(3) on the
    # x BlockSpec is worth a 2-vs-3 sweep on v7x.
    return pl.pallas_call(
        kernel,
        out_shape=jax.ShapeDtypeStruct((N, C, T), x.dtype),
        grid_spec=pltpu.PrefetchScalarGridSpec(
            num_scalar_prefetch=0,
            grid=(N, 2 * nt),
            in_specs=[
                pl.BlockSpec((None, C, tile_t), x_map),
                pl.BlockSpec((C, 1), par_map),
                pl.BlockSpec((C, 1), par_map),
            ],
            out_specs=pl.BlockSpec((None, C, tile_t), out_map),
            scratch_shapes=[
                pltpu.VMEM((1, tile_t), jnp.float32),   # partial sum
                pltpu.VMEM((1, tile_t), jnp.float32),   # partial sum of squares
                pltpu.VMEM((C, 1), jnp.float32),        # scale = gamma * inv_std
                pltpu.VMEM((C, 1), jnp.float32),        # shift = beta - mean*scale
            ],
        ),
        compiler_params=pltpu.CompilerParams(
            dimension_semantics=("parallel", "arbitrary"),
            vmem_limit_bytes=int(budget),
        ),
        cost_estimate=pl.CostEstimate(
            flops=7 * N * C * T,
            transcendentals=N,
            bytes_accessed=3 * N * C * T * itemsize,
        ),
    )(x, gamma, beta)


# ---------------------------------------------------------------------------
# public wrapper
# ---------------------------------------------------------------------------
def global_channel_layer_norm(x, gamma=None, beta=None, eps=1e-5, *,
                              force_tiled=False, tile_t=None, chunk=None):
    """gLN forward. x: (N, C, T); gamma, beta: (C, 1) or None (no affine).

    tile_t / chunk are optional debug overrides for the internal tiling.
    """
    if x.ndim != 3:
        raise RuntimeError("GlobalChannelLayerNorm accepts 3D tensor as input")
    N, C, T = x.shape
    if gamma is None:                                  # elementwise_affine=False
        gamma = jnp.ones((C, 1), jnp.float32)
    if beta is None:
        beta = jnp.zeros((C, 1), jnp.float32)
    gamma = jnp.asarray(gamma).reshape(C, 1)
    beta = jnp.asarray(beta).reshape(C, 1)

    budget = _vmem_budget_bytes()
    itemsize = jnp.dtype(x.dtype).itemsize

    ck = _pick_chunk(T, chunk)
    t_blk = pl.cdiv(T, ck) * ck
    # Exactly what the full-slab path keeps resident: double-buffered input and
    # output (C, t_blk) blocks, lane-padded gamma/beta buffers, tiny accumulators.
    full_bytes = (4 * C * t_blk * itemsize
                  + 4 * _round_up(C, 8) * 128 * 4
                  + 2 * 8 * ck * 4)
    use_full = (not force_tiled) and full_bytes <= (budget * 17) // 20

    if use_full:
        return _gcln_full_slab(x, gamma, beta, eps, budget, ck)

    tt = _pick_tile_t(C, T, itemsize, budget, tile_t)
    return _gcln_tiled(x, gamma, beta, eps, budget, tt)


# ---------------------------------------------------------------------------
# reference + self-test
# ---------------------------------------------------------------------------
def _reference(x, gamma, beta, eps=1e-5):
    mean = jnp.mean(x, axis=(1, 2), keepdims=True)
    var = jnp.mean((x - mean) ** 2, axis=(1, 2), keepdims=True)
    return gamma[None] * (x - mean) / jnp.sqrt(var + eps) + beta[None]


if __name__ == "__main__":
    eps = 1e-5
    key = jax.random.PRNGKey(0)
    ks = jax.random.split(key, 8)

    # 1) Full-slab path, module-default affine params, tiny N x C x T.
    N, C, T = 2, 4, 16
    x = jax.random.normal(ks[0], (N, C, T), dtype=jnp.float32)
    gamma = jnp.ones((C, 1), jnp.float32)
    beta = jnp.zeros((C, 1), jnp.float32)
    out = jax.block_until_ready(global_channel_layer_norm(x, gamma, beta, eps=eps))
    ref = _reference(x, gamma, beta, eps=eps)
    assert out.shape == (N, C, T)
    assert jnp.allclose(out, ref, atol=1e-4, rtol=1e-3)

    # 2) Full-slab path with T not a multiple of the internal chunk
    #    (exercises the fori_loop + masked padded last chunk), non-trivial affine.
    N2, C2, T2 = 1, 6, 200
    x2 = jax.random.normal(ks[1], (N2, C2, T2), dtype=jnp.float32) * 2.0 + 0.5
    g2 = jax.random.normal(ks[2], (C2, 1), dtype=jnp.float32)
    b2 = jax.random.normal(ks[3], (C2, 1), dtype=jnp.float32)
    out2 = jax.block_until_ready(
        global_channel_layer_norm(x2, g2, b2, eps=eps, chunk=128))
    assert jnp.allclose(out2, _reference(x2, g2, b2, eps=eps),
                        atol=1e-4, rtol=1e-3)

    # 3) Fused single-call tiled path (forced), T not a multiple of tile_t
    #    -> multi-tile accumulation, masked edge tile, scratch scale/shift.
    N3, C3, T3 = 2, 8, 400
    x3 = jax.random.normal(ks[4], (N3, C3, T3), dtype=jnp.float32) - 1.5
    g3 = jax.random.normal(ks[5], (C3, 1), dtype=jnp.float32)
    b3 = jax.random.normal(ks[6], (C3, 1), dtype=jnp.float32)
    out3 = jax.block_until_ready(
        global_channel_layer_norm(x3, g3, b3, eps=eps,
                                  force_tiled=True, tile_t=128))
    assert out3.shape == (N3, C3, T3)
    assert jnp.allclose(out3, _reference(x3, g3, b3, eps=eps),
                        atol=1e-4, rtol=1e-3)

    print("KERNEL_OK")
</pallas_src>

<mosaic_0001>
module attributes {stable_mosaic.version = 11 : i64} {
  func.func @_gcln_full_kernel(%arg0: i32, %arg1: memref<1x4x128xf32, #tpu.memory_space<vmem>>, %arg2: memref<4x1xf32, #tpu.memory_space<vmem>>, %arg3: memref<4x1xf32, #tpu.memory_space<vmem>>, %arg4: memref<1x4x128xf32, #tpu.memory_space<vmem>>, %arg5: memref<1x128xf32, #tpu.memory_space<vmem>>, %arg6: memref<1x128xf32, #tpu.memory_space<vmem>>) attributes {dimension_semantics = [#tpu.dimension_semantics<parallel>], iteration_bounds = array<i64: 2>, scalar_prefetch = 0 : i64, scratch_operands = 2 : i64, tpu.core_type = #tpu.core_type<tc>, window_params = [{transform_indices = @transform_0, window_bounds = array<i64: 1, 4, 128>}, {pipeline_mode = #tpu.pipeline_mode<synchronous>, transform_indices = @transform_1, window_bounds = array<i64: 4, 1>}, {pipeline_mode = #tpu.pipeline_mode<synchronous>, transform_indices = @transform_2, window_bounds = array<i64: 4, 1>}, {transform_indices = @transform_3, window_bounds = array<i64: 1, 4, 128>}]} {
    %cst = arith.constant 0.000000e+00 : f32
    %0 = vector.broadcast %cst : f32 to vector<1x128xf32>
    %c0 = arith.constant 0 : index
    %c0_0 = arith.constant 0 : index
    %1 = vector.load %arg5[%c0, %c0_0] : memref<1x128xf32, #tpu.memory_space<vmem>>, vector<1x128xf32>
    tpu.vector_store %arg5[%c0, %c0_0], %0 {strides = array<i32>} : memref<1x128xf32, #tpu.memory_space<vmem>>, vector<1x128xf32>,
    %cst_1 = arith.constant 0.000000e+00 : f32
    %2 = vector.broadcast %cst_1 : f32 to vector<1x128xf32>
    %c0_2 = arith.constant 0 : index
    %c0_3 = arith.constant 0 : index
    %3 = vector.load %arg6[%c0_2, %c0_3] : memref<1x128xf32, #tpu.memory_space<vmem>>, vector<1x128xf32>
    tpu.vector_store %arg6[%c0_2, %c0_3], %2 {strides = array<i32>} : memref<1x128xf32, #tpu.memory_space<vmem>>, vector<1x128xf32>,
    %c0_i32 = arith.constant 0 : i32
    %c0_i32_4 = arith.constant 0 : i32
    %4 = arith.addi %c0_i32, %c0_i32_4 : i32
    %c1_i32 = arith.constant 1 : i32
    scf.for %arg7 = %c0_i32 to %4 step %c1_i32  : i32 {
      %c128_i32_41 = arith.constant 128 : i32
      %68 = arith.muli %arg7, %c128_i32_41 : i32
      %69 = tpu.assume_multiple %68, 128 : i32
      %c0_42 = arith.constant 0 : index
      %c0_43 = arith.constant 0 : index
      %70 = arith.index_cast %69 : i32 to index
      %71 = vector.load %arg1[%c0_42, %c0_43, %70] : memref<1x4x128xf32, #tpu.memory_space<vmem>>, vector<1x4x128xf32>
      %72 = vector.shape_cast %71 : vector<1x4x128xf32> to vector<4x128xf32>
      %c0_44 = arith.constant 0 : index
      %c0_45 = arith.constant 0 : index
      %73 = vector.load %arg5[%c0_44, %c0_45] : memref<1x128xf32, #tpu.memory_space<vmem>>, vector<1x128xf32>
      %cst_46 = arith.constant dense<0.000000e+00> : vector<128xf32>
      %74 = vector.multi_reduction <add>, %72, %cst_46 [0] : vector<4x128xf32> to vector<128xf32>
      %75 = vector.shape_cast %74 : vector<128xf32> to vector<1x128xf32>
      %76 = arith.addf %73, %75 : vector<1x128xf32>
      %c0_47 = arith.constant 0 : index
      %c0_48 = arith.constant 0 : index
      %77 = vector.load %arg5[%c0_47, %c0_48] : memref<1x128xf32, #tpu.memory_space<vmem>>, vector<1x128xf32>
      tpu.vector_store %arg5[%c0_47, %c0_48], %76 {strides = array<i32>} : memref<1x128xf32, #tpu.memory_space<vmem>>, vector<1x128xf32>,
      %c0_49 = arith.constant 0 : index
      %c0_50 = arith.constant 0 : index
      %78 = vector.load %arg6[%c0_49, %c0_50] : memref<1x128xf32, #tpu.memory_space<vmem>>, vector<1x128xf32>
      %79 = arith.mulf %72, %72 : vector<4x128xf32>
      %cst_51 = arith.constant dense<0.000000e+00> : vector<128xf32>
      %80 = vector.multi_reduction <add>, %79, %cst_51 [0] : vector<4x128xf32> to vector<128xf32>
      %81 = vector.shape_cast %80 : vector<128xf32> to vector<1x128xf32>
      %82 = arith.addf %78, %81 : vector<1x128xf32>
      %c0_52 = arith.constant 0 : index
      %c0_53 = arith.constant 0 : index
      %83 = vector.load %arg6[%c0_52, %c0_53] : memref<1x128xf32, #tpu.memory_space<vmem>>, vector<1x128xf32>
      tpu.vector_store %arg6[%c0_52, %c0_53], %82 {strides = array<i32>} : memref<1x128xf32, #tpu.memory_space<vmem>>, vector<1x128xf32>,
    }
    %c0_i32_5 = arith.constant 0 : i32
    %c0_6 = arith.constant 0 : index
    %c0_7 = arith.constant 0 : index
    %c0_8 = arith.constant 0 : index
    %5 = vector.load %arg1[%c0_6, %c0_7, %c0_8] : memref<1x4x128xf32, #tpu.memory_space<vmem>>, vector<1x4x128xf32>
    %6 = vector.shape_cast %5 : vector<1x4x128xf32> to vector<4x128xf32>
    %7 = tpu.iota {dimensions = array<i32: 1>} : vector<4x128xi32>
    %c0_i32_9 = arith.constant 0 : i32
    %8 = vector.broadcast %c0_i32_9 : i32 to vector<4x128xi32>
    %9 = arith.addi %7, %8 : vector<4x128xi32>
    %c16_i32 = arith.constant 16 : i32
    %10 = vector.broadcast %c16_i32 : i32 to vector<4x128xi32>
    %11 = arith.cmpi slt, %9, %10 : vector<4x128xi32>
    %cst_10 = arith.constant 0.000000e+00 : f32
    %12 = vector.broadcast %cst_10 : f32 to vector<4x128xf32>
    %13 = arith.select %11, %6, %12 : vector<4x128xi1>, vector<4x128xf32>
    %c0_11 = arith.constant 0 : index
    %c0_12 = arith.constant 0 : index
    %14 = vector.load %arg5[%c0_11, %c0_12] : memref<1x128xf32, #tpu.memory_space<vmem>>, vector<1x128xf32>
    %cst_13 = arith.constant dense<0.000000e+00> : vector<128xf32>
    %15 = vector.multi_reduction <add>, %13, %cst_13 [0] : vector<4x128xf32> to vector<128xf32>
    %16 = vector.shape_cast %15 : vector<128xf32> to vector<1x128xf32>
    %17 = arith.addf %14, %16 : vector<1x128xf32>
    %c0_14 = arith.constant 0 : index
    %c0_15 = arith.constant 0 : index
    %18 = vector.load %arg5[%c0_14, %c0_15] : memref<1x128xf32, #tpu.memory_space<vmem>>, vector<1x128xf32>
    tpu.vector_store %arg5[%c0_14, %c0_15], %17 {strides = array<i32>} : memref<1x128xf32, #tpu.memory_space<vmem>>, vector<1x128xf32>,
    %c0_16 = arith.constant 0 : index
    %c0_17 = arith.constant 0 : index
    %19 = vector.load %arg6[%c0_16, %c0_17] : memref<1x128xf32, #tpu.memory_space<vmem>>, vector<1x128xf32>
    %20 = arith.mulf %13, %13 : vector<4x128xf32>
    %cst_18 = arith.constant dense<0.000000e+00> : vector<128xf32>
    %21 = vector.multi_reduction <add>, %20, %cst_18 [0] : vector<4x128xf32> to vector<128xf32>
    %22 = vector.shape_cast %21 : vector<128xf32> to vector<1x128xf32>
    %23 = arith.addf %19, %22 : vector<1x128xf32>
    %c0_19 = arith.constant 0 : index
    %c0_20 = arith.constant 0 : index
    %24 = vector.load %arg6[%c0_19, %c0_20] : memref<1x128xf32, #tpu.memory_space<vmem>>, vector<1x128xf32>
    tpu.vector_store %arg6[%c0_19, %c0_20], %23 {strides = array<i32>} : memref<1x128xf32, #tpu.memory_space<vmem>>, vector<1x128xf32>,
    %c0_21 = arith.constant 0 : index
    %c0_22 = arith.constant 0 : index
    %25 = vector.load %arg5[%c0_21, %c0_22] : memref<1x128xf32, #tpu.memory_space<vmem>>, vector<1x128xf32>
    %26 = vector.shape_cast %25 : vector<1x128xf32> to vector<1x1x128xf32>
    %cst_23 = arith.constant dense<0.000000e+00> : vector<1xf32>
    %27 = vector.multi_reduction <add>, %26, %cst_23 [1, 2] : vector<1x1x128xf32> to vector<1xf32>
    %28 = vector.shape_cast %27 : vector<1xf32> to vector<1x1x1xf32>
    %29 = vector.extract %28[0, 0, 0] : f32 from vector<1x1x1xf32>
    %30 = vector.broadcast %29 : f32 to vector<1x1xf32>
    %c0_24 = arith.constant 0 : index
    %c0_25 = arith.constant 0 : index
    %31 = vector.load %arg6[%c0_24, %c0_25] : memref<1x128xf32, #tpu.memory_space<vmem>>, vector<1x128xf32>
    %32 = vector.shape_cast %31 : vector<1x128xf32> to vector<1x1x128xf32>
    %cst_26 = arith.constant dense<0.000000e+00> : vector<1xf32>
    %33 = vector.multi_reduction <add>, %32, %cst_26 [1, 2] : vector<1x1x128xf32> to vector<1xf32>
    %34 = vector.shape_cast %33 : vector<1xf32> to vector<1x1x1xf32>
    %35 = vector.extract %34[0, 0, 0] : f32 from vector<1x1x1xf32>
    %36 = vector.broadcast %35 : f32 to vector<1x1xf32>
    %cst_27 = arith.constant 1.562500e-02 : f32
    %37 = vector.broadcast %cst_27 : f32 to vector<1x1xf32>
    %38 = arith.mulf %30, %37 : vector<1x1xf32>
    %cst_28 = arith.constant 1.562500e-02 : f32
    %39 = vector.broadcast %cst_28 : f32 to vector<1x1xf32>
    %40 = arith.mulf %36, %39 : vector<1x1xf32>
    %41 = arith.mulf %38, %38 : vector<1x1xf32>
    %42 = arith.subf %40, %41 : vector<1x1xf32>
    %cst_29 = arith.constant 0.000000e+00 : f32
    %43 = vector.broadcast %cst_29 : f32 to vector<1x1xf32>
    %44 = arith.maximumf %42, %43 : vector<1x1xf32>
    %cst_30 = arith.constant 9.99999974E-6 : f32
    %45 = vector.broadcast %cst_30 : f32 to vector<1x1xf32>
    %46 = arith.addf %44, %45 : vector<1x1xf32>
    %47 = math.rsqrt %46 : vector<1x1xf32>
    %c0_31 = arith.constant 0 : index
    %c0_32 = arith.constant 0 : index
    %48 = vector.load %arg2[%c0_31, %c0_32] : memref<4x1xf32, #tpu.memory_space<vmem>>, vector<4x1xf32>
    %49 = vector.broadcast %47 : vector<1x1xf32> to vector<4x1xf32>
    %50 = arith.mulf %48, %49 : vector<4x1xf32>
    %c0_33 = arith.constant 0 : index
    %c0_34 = arith.constant 0 : index
    %51 = vector.load %arg3[%c0_33, %c0_34] : memref<4x1xf32, #tpu.memory_space<vmem>>, vector<4x1xf32>
    %52 = vector.broadcast %38 : vector<1x1xf32> to vector<4x1xf32>
    %53 = arith.mulf %52, %50 : vector<4x1xf32>
    %54 = arith.subf %51, %53 : vector<4x1xf32>
    %c0_i32_35 = arith.constant 0 : i32
    %c128_i32 = arith.constant 128 : i32
    %55 = arith.muli %c0_i32_35, %c128_i32 : i32
    %56 = tpu.assume_multiple %55, 128 : i32
    %c0_36 = arith.constant 0 : index
    %c0_37 = arith.constant 0 : index
    %57 = arith.index_cast %56 : i32 to index
    %58 = vector.load %arg1[%c0_36, %c0_37, %57] : memref<1x4x128xf32, #tpu.memory_space<vmem>>, vector<1x4x128xf32>
    %59 = vector.shape_cast %58 : vector<1x4x128xf32> to vector<4x128xf32>
    %60 = vector.broadcast %50 : vector<4x1xf32> to vector<4x128xf32>
    %61 = arith.mulf %59, %60 : vector<4x128xf32>
    %62 = vector.broadcast %54 : vector<4x1xf32> to vector<4x128xf32>
    %63 = arith.addf %61, %62 : vector<4x128xf32>
    %c0_38 = arith.constant 0 : index
    %c0_39 = arith.constant 0 : index
    %64 = arith.index_cast %56 : i32 to index
    %65 = vector.load %arg4[%c0_38, %c0_39, %64] : memref<1x4x128xf32, #tpu.memory_space<vmem>>, vector<1x4x128xf32>
    %66 = vector.shape_cast %65 : vector<1x4x128xf32> to vector<4x128xf32>
    %67 = vector.shape_cast %63 : vector<4x128xf32> to vector<1x4x128xf32>
    tpu.vector_store %arg4[%c0_38, %c0_39, %64], %67 {strides = array<i32>} : memref<1x4x128xf32, #tpu.memory_space<vmem>>, vector<1x4x128xf32>,
    %c1_i32_40 = arith.constant 1 : i32
    return
  }
  func.func @transform_0(%arg0: i32) -> (i32, i32, i32) {
    %c0_i32 = arith.constant 0 : i32
    %c0_i32_0 = arith.constant 0 : i32
    %c0_i32_1 = arith.constant 0 : i32
    return %arg0, %c0_i32, %c0_i32_0 : i32, i32, i32
  }
  func.func @transform_1(%arg0: i32) -> (i32, i32) {
    %c0_i32 = arith.constant 0 : i32
    %c0_i32_0 = arith.constant 0 : i32
    %c0_i32_1 = arith.constant 0 : i32
    return %c0_i32, %c0_i32_0 : i32, i32
  }
  func.func @transform_2(%arg0: i32) -> (i32, i32) {
    %c0_i32 = arith.constant 0 : i32
    %c0_i32_0 = arith.constant 0 : i32
    %c0_i32_1 = arith.constant 0 : i32
    return %c0_i32, %c0_i32_0 : i32, i32
  }
  func.func @transform_3(%arg0: i32) -> (i32, i32, i32) {
    %c0_i32 = arith.constant 0 : i32
    %c0_i32_0 = arith.constant 0 : i32
    %c0_i32_1 = arith.constant 0 : i32
    return %arg0, %c0_i32, %c0_i32_0 : i32, i32, i32
  }
}

</mosaic_0001>

<llo_original>
// kernel: tpu_custom_call.1
$region0: #{tpu_custom_call.1}
  #allocation0 [shape = 'u32[]', space=smem, size = 0x4, offset = 0x4, fixed_abs, tag = 'smem constant byte address 0x4 - core index']
  #allocation1 [shape = 'u32[144,128]{1,0:T(1,128)}', space=vmem, size = 0x12000, scoped, tag = 'internal scratch']
  #allocation2 [shape = 'f32[1,128]{1,0:T(1,128)}', space=vmem, size = 0x200, scoped, tag = 'scratch operand']
  #allocation3 [shape = 'f32[1,128]{1,0:T(1,128)}', space=vmem, size = 0x200, scoped, tag = 'scratch operand']
  %s0 = inlined_call_operand.hbm [shape: f32[2,4,16], index: 0, kind: input, shape index: {}]
  %s1 = inlined_call_operand.hbm [shape: f32[4,1], index: 1, kind: input, shape index: {}]
  %s2 = inlined_call_operand.hbm [shape: f32[4,1], index: 2, kind: input, shape index: {}]
  %s3 = inlined_call_operand.hbm [shape: f32[2,4,16], index: 3, kind: output, shape index: {}]
  %s4 = sld [smem:[#allocation0]]
  $region57: #{tpu_custom_call.1} parent=0
    _
  %s6 = ssub.s32 1, %s4
  %s7 = scalar_select 0, %s6, %s4
  $region1: #{tpu_custom_call.1} parent=0
    #allocation4 [shape = 'u8[4096]{0}', space=vmem, size = 0x1000, scoped, tag = 'input window, operand 0']
    #allocation5 [shape = 's32[2]{0}', space=sflag, size = 0x8, scoped, tag = 'scoped memory for tpu_custom_call.1']
    #allocation6 [shape = 's32[2]{0}', space=sflag, size = 0x8, scoped, tag = 'scoped memory for tpu_custom_call.1']
    #allocation7 [shape = 'u8[2048]{0}', space=vmem, size = 0x800, scoped, tag = 'input window, operand 1, single buffered']
    #allocation8 [shape = 's32[1]{0}', space=sflag, size = 0x4, scoped, tag = 'scoped memory for tpu_custom_call.1']
    #allocation9 [shape = 'u8[2048]{0}', space=vmem, size = 0x800, scoped, tag = 'input window, operand 2, single buffered']
    #allocation10 [shape = 'u8[4096]{0}', space=vmem, size = 0x1000, scoped, tag = 'output window, operand 0']
    %8 = vsyncpa [#allocation5], 0
    %s9 = scalar_lea.sflag [#allocation5], 1
    %10 = vsyncpa %s9, 0
    %11 = vsyncpa [#allocation8], 0
    %12 = vsyncpa [#allocation6], 0
    %s13 = scalar_lea.sflag [#allocation6], 1
    %14 = vsyncpa %s13, 0
    loop: start=0, step=1, limit=4
    $region2: #{tpu_custom_call.1} parent=1 // loop_pre_header
      _
    $region3: #{tpu_custom_call.1} parent=1 // loop_header
      %s16 = sphi 0, %s20
      %p17 = scmp.ge.s32.totalorder %s16, 4
      %s26 = sphi 0, %s28
      %s29 = sphi 0, %s26
      %s30 = sphi 0, %s29
      %s46 = sphi 0, %s30
      %s50 = sphi 0, %s50
      %s52 = sphi 0, %s50
      %s53 = sphi 0, %s52
      %s67 = sphi 0, %s53
      %s71 = sphi 0, %s71
      %s73 = sphi 0, %s71
      %s74 = sphi 0, %s73
      %s88 = sphi 0, %s74
      %s94 = sphi 0, %s96
      %s97 = sphi 0, %s94
      %s98 = sphi 0, %s97
      %s114 = sphi 0, %s98
    $region4: #{tpu_custom_call.1} parent=1 // loop_header_branch
      %19 = sbr.rel (%p17) target = $region8
    $region5: #{tpu_custom_call.1} parent=1 // loop_body
      %s21 = ssub.s32 %s16, 1
      %s22 = ssub.s32 %s16, 2
      %s23 = sadd.s32 %s16, 1
      %s24 = ssub.s32 %s16, %s23
      %p25 = scmp.eq.s32.totalorder %s24, 0
      %s27 = sadd.s32 %s26, 1
      %s28 = scalar_select %p25, %s26, %s27
      %p31 = pneg %p25
      %p32 = scmp.eq.s32.totalorder %s16, 1
      %p33 = por %p31, %p32
      %p34 = scmp.ne.s32.totalorder %s26, %s29
      %p35 = scmp.eq.s32.totalorder %s16, 0
      %p36 = por %p34, %p35
      %p37 = scmp.ne.s32.totalorder %s26, %s29
      %p38 = scmp.eq.s32.totalorder %s21, 1
      %p39 = por %p37, %p38
      %p40 = scmp.ne.s32.totalorder %s29, %s30
      %p41 = scmp.eq.s32.totalorder %s21, 0
      %p42 = por %p40, %p41
      %p43 = scmp.ne.s32.totalorder %s29, %s30
      %p44 = scmp.eq.s32.totalorder %s22, 1
      %p45 = por %p43, %p44
      %p47 = scmp.ne.s32.totalorder %s30, %s46
      %p48 = scmp.eq.s32.totalorder %s22, 0
      %p49 = por %p47, %p48
      %s51 = sadd.s32 %s50, 1
      %p54 = scmp.eq.s32.totalorder %s16, 1
      %p55 = scmp.ne.s32.totalorder %s50, %s52
      %p56 = scmp.eq.s32.totalorder %s16, 0
      %p57 = por %p55, %p56
      %p58 = scmp.ne.s32.totalorder %s50, %s52
      %p59 = scmp.eq.s32.totalorder %s21, 1
      %p60 = por %p58, %p59
      %p61 = scmp.ne.s32.totalorder %s52, %s53
      %p62 = scmp.eq.s32.totalorder %s21, 0
      %p63 = por %p61, %p62
      %p64 = scmp.ne.s32.totalorder %s52, %s53
      %p65 = scmp.eq.s32.totalorder %s22, 1
      %p66 = por %p64, %p65
      %p68 = scmp.ne.s32.totalorder %s53, %s67
      %p69 = scmp.eq.s32.totalorder %s22, 0
      %p70 = por %p68, %p69
      %s72 = sadd.s32 %s71, 1
      %p75 = scmp.eq.s32.totalorder %s16, 1
      %p76 = scmp.ne.s32.totalorder %s71, %s73
      %p77 = scmp.eq.s32.totalorder %s16, 0
      %p78 = por %p76, %p77
      %p79 = scmp.ne.s32.totalorder %s71, %s73
      %p80 = scmp.eq.s32.totalorder %s21, 1
      %p81 = por %p79, %p80
      %p82 = scmp.ne.s32.totalorder %s73, %s74
      %p83 = scmp.eq.s32.totalorder %s21, 0
      %p84 = por %p82, %p83
      %p85 = scmp.ne.s32.totalorder %s73, %s74
      %p86 = scmp.eq.s32.totalorder %s22, 1
      %p87 = por %p85, %p86
      %p89 = scmp.ne.s32.totalorder %s74, %s88
      %p90 = scmp.eq.s32.totalorder %s22, 0
      %p91 = por %p89, %p90
      %s92 = ssub.s32 %s16, %s23
      %p93 = scmp.eq.s32.totalorder %s92, 0
      %s95 = sadd.s32 %s94, 1
      %s96 = scalar_select %p93, %s94, %s95
      %p99 = pneg %p93
      %p100 = scmp.eq.s32.totalorder %s16, 1
      %p101 = por %p99, %p100
      %p102 = scmp.ne.s32.totalorder %s94, %s97
      %p103 = scmp.eq.s32.totalorder %s16, 0
      %p104 = por %p102, %p103
      %p105 = scmp.ne.s32.totalorder %s94, %s97
      %p106 = scmp.eq.s32.totalorder %s21, 1
      %p107 = por %p105, %p106
      %p108 = scmp.ne.s32.totalorder %s97, %s98
      %p109 = scmp.eq.s32.totalorder %s21, 0
      %p110 = por %p108, %p109
      %p111 = scmp.ne.s32.totalorder %s97, %s98
      %p112 = scmp.eq.s32.totalorder %s22, 1
      %p113 = por %p111, %p112
      %p115 = scmp.ne.s32.totalorder %s98, %s114
      %p116 = scmp.eq.s32.totalorder %s22, 0
      %p117 = por %p115, %p116
      %p118 = scmp.le.s32.totalorder 1, %s16
      %p119 = scmp.lt.s32.totalorder %s16, 3
      %p120 = pnand %p118, %p119
      %p121 = pneg %p120
      // Predicated region
      $region9: #{tpu_custom_call.1} parent=5 // pred_check
        _
      $region10: #{tpu_custom_call.1} parent=5 // pred_check_branch
        %123 = sbr.rel (%p120) target = $region12
      $region11: #{tpu_custom_call.1} parent=5 // pred_region
        %s124 = ssub.s32 %s16, 1
        // Predicated region
        $region13: #{tpu_custom_call.1} parent=11 // pred_check
          %p125 = pneg %p63
        $region14: #{tpu_custom_call.1} parent=11 // pred_check_branch
          %127 = sbr.rel (%p125) target = $region16
        $region15: #{tpu_custom_call.1} parent=11 // pred_region
          %s129 = ssub.s32 64, 64
          %130 = vsyncadd [#allocation8], %s129
          %s132 = sshll.u32 [#allocation7], 4
          %s133 = int_to_ptr.vmem [resolvable:$true] %s132
          %135 = dma.hbm_to_vmem [thread:$0]  %s1, 64, %s133, [#allocation8]
        $region16: #{tpu_custom_call.1} parent=11 // pred_fallthru
          _
        // Predicated region
        $region17: #{tpu_custom_call.1} parent=11 // pred_check
          %p136 = pneg %p84
        $region18: #{tpu_custom_call.1} parent=11 // pred_check_branch
          %138 = sbr.rel (%p136) target = $region20
        $region19: #{tpu_custom_call.1} parent=11 // pred_region
          %s140 = ssub.s32 64, 64
          %141 = vsyncadd [#allocation8], %s140
          %s143 = sshll.u32 [#allocation9], 4
          %s144 = int_to_ptr.vmem [resolvable:$true] %s143
          %146 = dma.hbm_to_vmem [thread:$0]  %s2, 64, %s144, [#allocation8]
        $region20: #{tpu_custom_call.1} parent=11 // pred_fallthru
          _
      $region12: #{tpu_custom_call.1} parent=5 // pred_fallthru
        _
      %p147 = scmp.lt.s32.totalorder %s16, 2
      // Predicated region
      $region21: #{tpu_custom_call.1} parent=5 // pred_check
        %p148 = pneg %p147
      $region22: #{tpu_custom_call.1} parent=5 // pred_check_branch
        %150 = sbr.rel (%p148) target = $region24
      $region23: #{tpu_custom_call.1} parent=5 // pred_region
        // Predicated region
        $region25: #{tpu_custom_call.1} parent=23 // pred_check
          %p151 = pneg %p36
        $region26: #{tpu_custom_call.1} parent=23 // pred_check_branch
          %153 = sbr.rel (%p151) target = $region28
        $region27: #{tpu_custom_call.1} parent=23 // pred_region
          %s154 = sand.u32 %s26, 1
          %s155 = scalar_lea.sflag [#allocation5], %s154
          %s156 = sand.u32 %s26, 1
          %s157 = smul.addr %s156, 4
          %s158 = scalar_lea.vmem [#allocation4], %s157
          %s160 = ssub.s32 64, 64
          %161 = vsyncadd %s155, %s160
          %s162 = smul.addr %s16, 64
          %s163 = scalar_lea.hbm %s0, %s162
          %s165 = sshll.u32 %s158, 4
          %s166 = int_to_ptr.vmem [resolvable:$true] %s165
          %168 = dma.hbm_to_vmem [thread:$0]  %s163, 64, %s166, %s155
        $region28: #{tpu_custom_call.1} parent=23 // pred_fallthru
          _
      $region24: #{tpu_custom_call.1} parent=5 // pred_fallthru
        _
      %p169 = scmp.le.s32.totalorder 1, %s16
      %p170 = scmp.lt.s32.totalorder %s16, 3
      %p171 = pnand %p169, %p170
      %p172 = pneg %p171
      // Predicated region
      $region29: #{tpu_custom_call.1} parent=5 // pred_check
        _
      $region30: #{tpu_custom_call.1} parent=5 // pred_check_branch
        %174 = sbr.rel (%p171) target = $region32
      $region31: #{tpu_custom_call.1} parent=5 // pred_region
        %s175 = ssub.s32 %s16, 1
        %s176 = sand.u32 %s29, 1
        %s177 = scalar_lea.sflag [#allocation5], %s176
        %s178 = sand.u32 %s29, 1
        %s179 = smul.addr %s178, 4
        %s180 = scalar_lea.vmem [#allocation4], %s179
        // Predicated region
        $region33: #{tpu_custom_call.1} parent=31 // pred_check
          %p181 = pneg %p42
        $region34: #{tpu_custom_call.1} parent=31 // pred_check_branch
          %183 = sbr.rel (%p181) target = $region36
        $region35: #{tpu_custom_call.1} parent=31 // pred_region
          %184 = dma.done %s177, 64
        $region36: #{tpu_custom_call.1} parent=31 // pred_fallthru
          _
        // Predicated region
        $region37: #{tpu_custom_call.1} parent=31 // pred_check
          %p185 = pneg %p63
        $region38: #{tpu_custom_call.1} parent=31 // pred_check_branch
          %187 = sbr.rel (%p185) target = $region40
        $region39: #{tpu_custom_call.1} parent=31 // pred_region
          %188 = dma.done [#allocation8], 64
        $region40: #{tpu_custom_call.1} parent=31 // pred_fallthru
          _
        // Predicated region
        $region41: #{tpu_custom_call.1} parent=31 // pred_check
          %p189 = pneg %p84
        $region42: #{tpu_custom_call.1} parent=31 // pred_check_branch
          %191 = sbr.rel (%p189) target = $region44
        $region43: #{tpu_custom_call.1} parent=31 // pred_region
          %192 = dma.done [#allocation8], 64
        $region44: #{tpu_custom_call.1} parent=31 // pred_fallthru
          _
        %s193 = sand.u32 %s29, 1
        %s194 = scalar_lea.sflag [#allocation5], %s193
        %s195 = sand.u32 %s29, 1
        %s196 = smul.addr %s195, 4
        %s197 = scalar_lea.vmem [#allocation4], %s196
        %p198 = pneg %p42
        %p199 = pneg %p39
        %p200 = pneg %p63
        %p201 = pneg %p60
        %p202 = pneg %p84
        %p203 = pneg %p81
        %p204 = pneg %p110
        %p205 = pneg %p107
        %s206 = sand.u32 %s97, 1
        %s207 = scalar_lea.sflag [#allocation6], %s206
        %s208 = sand.u32 %s97, 1
        %s209 = smul.addr %s208, 4
        %s210 = scalar_lea.vmem [#allocation10], %s209
        %211 = vst [vmem:[#allocation2] sm:$0x1] 0.0
        %212 = vst [vmem:[#allocation3] sm:$0x1] 0.0
        %v213 = vld [vmem:[%s180] sm:$0xf]
        %v214 = vlaneseq
        %v215 = vand.u32 %v214, 127
        %vm216 = vcmp.lt.s32.totalorder %v215, 16
        %v217 = vsel %vm216, %v213, 0.0
        %v218 = vld [vmem:[#allocation2] sm:$0x1]
        %vm219 = vcmask 1043456
        %v220 = vsel %vm219, %v217, 0.0
        %v221 = vrot.slane %v220, 4
        %v222 = vadd.f32 %v220, %v221
        %v223 = vrot.slane %v222, 2
        %v224 = vadd.f32 %v222, %v223
        %v225 = vrot.slane %v224, 1
        %v226 = vadd.f32 %v224, %v225
        %v227 = vadd.f32 %v218, %v226
        %228 = vst [vmem:[#allocation2] sm:$0x1] %v227
        %v229 = vld [vmem:[#allocation3] sm:$0x1]
        %v230 = vmul.f32 %v217, %v217
        %v231 = vsel %vm219, %v230, 0.0
        %v232 = vrot.slane %v231, 4
        %v233 = vadd.f32 %v231, %v232
        %v234 = vrot.slane %v233, 2
        %v235 = vadd.f32 %v233, %v234
        %v236 = vrot.slane %v235, 1
        %v237 = vadd.f32 %v235, %v236
        %v238 = vadd.f32 %v229, %v237
        %239 = vst [vmem:[#allocation3] sm:$0x1] %v238
        %v240 = vld [vmem:[#allocation2] sm:$0x1]
        %vm241 = vcmask 1040384
        %v242 = vsel %vm241, %v240, 0.0
        %243 = vadd.xlane.f32.xlu0 %v242
        %v244 = vpop.xlane.xlu0 %243
        %v245 = vrot.slane %v244, 4
        %v246 = vadd.f32 %v244, %v245
        %v247 = vrot.slane %v246, 2
        %v248 = vadd.f32 %v246, %v247
        %v249 = vrot.slane %v248, 1
        %v250 = vadd.f32 %v248, %v249
        %s251 = vtos %v250
        %v252 = vstv %s251
        %v253 = vld [vmem:[#allocation3] sm:$0x1]
        %v254 = vsel %vm241, %v253, 0.0
        %255 = vadd.xlane.f32.xlu0 %v254
        %v256 = vpop.xlane.xlu0 %255
        %v257 = vrot.slane %v256, 4
        %v258 = vadd.f32 %v256, %v257
        %v259 = vrot.slane %v258, 2
        %v260 = vadd.f32 %v258, %v259
        %v261 = vrot.slane %v260, 1
        %v262 = vadd.f32 %v260, %v261
        %s263 = vtos %v262
        %v264 = vstv %s263
        %v265 = vmul.f32 %v252, 0.015625
        %v266 = vmul.f32 %v264, 0.015625
        %v267 = vmul.f32 %v265, %v265
        %v268 = vsub.f32 %v266, %v267
        %v269 = vmax.f32 %v268, 0.0
        %v270 = vadd.f32 %v269, 1e-05
        %v271 = vrsqrt.pop %v270
        %v272 = vld [vmem:[#allocation7] sm:$0xf]
        %v273 = vmul.f32 %v272, %v271
        %v274 = vld [vmem:[#allocation9] sm:$0xf]
        %v275 = vmul.f32 %v265, %v273
        %v276 = vsub.f32 %v274, %v275
        %v277 = vld [vmem:[%s180] sm:$0xf]
        %279 = vset.pattern.permute.xlu0 0
        %280 = vperm.xlu0 %279, %v273
        %v281 = vpop.permute.xlu0 %280
        %v283 = vmul.f32 %v277, %v281
        %285 = vset.pattern.permute.xlu0 0
        %286 = vperm.xlu0 %285, %v276
        %v287 = vpop.permute.xlu0 %286
        %v289 = vadd.f32 %v283, %v287
        %290 = vst [vmem:[%s210] sm:$0xf] %v289
        %s291 = sand.u32 %s97, 1
        %s292 = scalar_lea.sflag [#allocation6], %s291
        %s293 = sand.u32 %s97, 1
        %s294 = smul.addr %s293, 4
        %s295 = scalar_lea.vmem [#allocation10], %s294
        // Predicated region
        $region45: #{tpu_custom_call.1} parent=31 // pred_check
          %p296 = pneg %p107
        $region46: #{tpu_custom_call.1} parent=31 // pred_check_branch
          %298 = sbr.rel (%p296) target = $region48
        $region47: #{tpu_custom_call.1} parent=31 // pred_region
          %s300 = ssub.s32 64, 64
          %301 = vsyncadd %s292, %s300
          %s302 = smul.addr %s21, 64
          %s303 = scalar_lea.hbm %s3, %s302
          %s305 = sshll.u32 %s295, 4
          %s306 = int_to_ptr.vmem [resolvable:$true] %s305
          %308 = dma.vmem_to_hbm [thread:$0]  %s306, 64, %s303, %s292
        $region48: #{tpu_custom_call.1} parent=31 // pred_fallthru
          _
      $region32: #{tpu_custom_call.1} parent=5 // pred_fallthru
        _
      %p309 = scmp.le.s32.totalorder 2, %s16
      // Predicated region
      $region49: #{tpu_custom_call.1} parent=5 // pred_check
        %p310 = pneg %p309
      $region50: #{tpu_custom_call.1} parent=5 // pred_check_branch
        %312 = sbr.rel (%p310) target = $region52
      $region51: #{tpu_custom_call.1} parent=5 // pred_region
        %s313 = ssub.s32 %s16, 2
        // Predicated region
        $region53: #{tpu_custom_call.1} parent=51 // pred_check
          %p314 = pneg %p113
        $region54: #{tpu_custom_call.1} parent=51 // pred_check_branch
          %316 = sbr.rel (%p314) target = $region56
        $region55: #{tpu_custom_call.1} parent=51 // pred_region
          %s317 = sand.u32 %s98, 1
          %s318 = scalar_lea.sflag [#allocation6], %s317
          %s319 = sand.u32 %s98, 1
          %s320 = smul.addr %s319, 4
          %s321 = scalar_lea.vmem [#allocation10], %s320
          %322 = dma.done %s318, 64
        $region56: #{tpu_custom_call.1} parent=51 // pred_fallthru
          _
      $region52: #{tpu_custom_call.1} parent=5 // pred_fallthru
        _
    $region6: #{tpu_custom_call.1} parent=1 // loop_footer
      %s20 = sadd.s32 1, %s16
    $region7: #{tpu_custom_call.1} parent=1 // loop_footer_branch
      %15 = sbr.rel target = $region3
    $region8: #{tpu_custom_call.1} parent=1 // loop_exit
      _
    %323 = vsyncpa [#allocation5], 1
    %s324 = scalar_lea.sflag [#allocation5], 1
    %325 = vsyncpa %s324, 1
    %326 = vsyncpa [#allocation8], 1
    %327 = vsyncpa [#allocation6], 1
    %s328 = scalar_lea.sflag [#allocation6], 1
    %329 = vsyncpa %s328, 1

</llo_original>
